<compile_context>
chip_gen: v7x
topology: tpu7x:2x2x1
jax: 0.10.0
libtpu: 0.0.40
codegen_flags: <defaults>
</compile_context>

<pallas_src>
import jax
import jax.numpy as jnp
from jax.experimental import pallas as pl
from jax.experimental.pallas import tpu as pltpu


def _round_up(n, m):
    return ((n + m - 1) // m) * m


def _task_hypernet_kernel(x_ref, w1_ref, w2_ref, o_ref):
    # x_ref:  (1, Din_pad)            augmented/padded input row  [x, 1, 0...]
    # w1_ref: (Din_pad, H_pad)        [W1; b1] with a bias-carrier column
    # w2_ref: (H_pad, Dout_pad)       [W2; b2]
    # o_ref:  (1, Dout_pad)
    h = jnp.dot(x_ref[...], w1_ref[...], preferred_element_type=jnp.float32)
    h = jnp.maximum(h, 0.0)                                  # ReLU (carrier 1.0 survives)
    out = jnp.dot(h, w2_ref[...], preferred_element_type=jnp.float32)
    o_ref[...] = out.astype(o_ref.dtype)


def pack_task_hypernet_params(w1, b1, w2, b2):
    """Fold biases into the weights and pad lane dims to multiples of 128.

    w1: (input_dim, hidden), b1: (hidden,), w2: (hidden, output_dim), b2: (output_dim,)
    Returns (w1_aug, w2_aug, dims) where dims = (input_dim, hidden, output_dim,
    din_pad, h_pad, dout_pad).
    """
    input_dim, hidden = w1.shape
    output_dim = w2.shape[1]
    dtype = w1.dtype

    din_pad = _round_up(input_dim + 1, 128)     # +1 for the appended 1.0 in x
    h_pad = _round_up(hidden + 1, 128)          # +1 for the bias-carrier column
    dout_pad = _round_up(output_dim, 128)

    # W1_aug: rows [0:input_dim] = W1, row input_dim = b1.
    # Column `hidden` is the bias carrier: only W1_aug[input_dim, hidden] = 1, so
    # (x_aug @ W1_aug)[hidden] == 1.0 and ReLU keeps it, letting row `hidden` of
    # W2_aug act as the second-layer bias.
    w1_aug = jnp.zeros((din_pad, h_pad), dtype)
    w1_aug = w1_aug.at[:input_dim, :hidden].set(w1)
    w1_aug = w1_aug.at[input_dim, :hidden].set(b1)
    w1_aug = w1_aug.at[input_dim, hidden].set(1.0)

    # W2_aug: rows [0:hidden] = W2, row hidden = b2.
    w2_aug = jnp.zeros((h_pad, dout_pad), dtype)
    w2_aug = w2_aug.at[:hidden, :output_dim].set(w2)
    w2_aug = w2_aug.at[hidden, :output_dim].set(b2)

    dims = (input_dim, hidden, output_dim, din_pad, h_pad, dout_pad)
    return w1_aug, w2_aug, dims


def task_hypernet_apply(task_embedding, w1_aug, w2_aug, dims):
    """Run the packed hypernet on one task embedding. Returns a (output_dim,) vector."""
    input_dim, _, output_dim, din_pad, h_pad, dout_pad = dims
    dtype = w1_aug.dtype

    # x_aug = [flatten(task_embedding), 1.0, 0, ..., 0]  -> (1, din_pad)
    x = task_embedding.reshape(-1).astype(dtype)
    x_aug = jnp.zeros((1, din_pad), dtype)
    x_aug = x_aug.at[0, :input_dim].set(x)
    x_aug = x_aug.at[0, input_dim].set(1.0)

    vmem = pl.BlockSpec(memory_space=pltpu.MemorySpace.VMEM)
    itemsize = jnp.dtype(dtype).itemsize
    bytes_accessed = int((x_aug.size + w1_aug.size + w2_aug.size + dout_pad) * itemsize)

    out = pl.pallas_call(
        _task_hypernet_kernel,
        out_shape=jax.ShapeDtypeStruct((1, dout_pad), dtype),
        in_specs=[vmem, vmem, vmem],
        out_specs=vmem,
        cost_estimate=pl.CostEstimate(
            flops=2 * (din_pad * h_pad + h_pad * dout_pad),
            transcendentals=0,
            bytes_accessed=bytes_accessed,
        ),
    )(x_aug, w1_aug, w2_aug)

    return out[0, :output_dim]                 # drop lane padding; final .view(-1)


def task_hypernet_forward(task_embedding, w1, b1, w2, b2):
    """Convenience wrapper matching the original module's forward.
       task_embedding: any shape whose total size == input_dim.
       w1: (input_dim, hidden), b1: (hidden,), w2: (hidden, output_dim), b2: (output_dim,)."""
    w1_aug, w2_aug, dims = pack_task_hypernet_params(w1, b1, w2, b2)
    return task_hypernet_apply(task_embedding, w1_aug, w2_aug, dims)


if __name__ == "__main__":
    # Small, deterministic configuration consistent with the module:
    #   input task embedding of shape (4, 8) -> flattened input_dim = 32
    #   config.task_hidden_dim = 128, output_dim = 64
    input_dim = 32
    task_hidden_dim = 128
    output_dim = 64

    key = jax.random.PRNGKey(0)
    k_x, k_w1, k_b1, k_w2, k_b2 = jax.random.split(key, 5)

    task_embedding = jax.random.normal(k_x, (4, 8), dtype=jnp.float32)

    # Deterministic synthetic parameters (uniform, roughly matching nn.Linear scale).
    lim1 = 1.0 / (input_dim ** 0.5)
    lim2 = 1.0 / (task_hidden_dim ** 0.5)
    w1 = jax.random.uniform(k_w1, (input_dim, task_hidden_dim),
                            minval=-lim1, maxval=lim1, dtype=jnp.float32)
    b1 = jax.random.uniform(k_b1, (task_hidden_dim,),
                            minval=-lim1, maxval=lim1, dtype=jnp.float32)
    w2 = jax.random.uniform(k_w2, (task_hidden_dim, output_dim),
                            minval=-lim2, maxval=lim2, dtype=jnp.float32)
    b2 = jax.random.uniform(k_b2, (output_dim,),
                            minval=-lim2, maxval=lim2, dtype=jnp.float32)

    out = task_hypernet_forward(task_embedding, w1, b1, w2, b2)
    out = jax.block_until_ready(out)

    # Pure-JAX reference check of the same semantics.
    x_flat = task_embedding.reshape(-1)
    ref = jnp.maximum(x_flat @ w1 + b1, 0.0) @ w2 + b2
    assert out.shape == (output_dim,)
    assert jnp.allclose(out, ref, atol=1e-5, rtol=1e-5)

    print("KERNEL_OK")
</pallas_src>

<mosaic_0001>
module attributes {stable_mosaic.version = 11 : i64} {
  func.func @_task_hypernet_kernel(%arg0: memref<1x128xf32, #tpu.memory_space<vmem>>, %arg1: memref<128x256xf32, #tpu.memory_space<vmem>>, %arg2: memref<256x128xf32, #tpu.memory_space<vmem>>, %arg3: memref<1x128xf32, #tpu.memory_space<vmem>>) attributes {dimension_semantics = [], scalar_prefetch = 0 : i64, scratch_operands = 0 : i64, tpu.core_type = #tpu.core_type<tc>} {
    %c0 = arith.constant 0 : index
    %c0_0 = arith.constant 0 : index
    %0 = vector.load %arg0[%c0, %c0_0] : memref<1x128xf32, #tpu.memory_space<vmem>>, vector<1x128xf32>
    %c0_1 = arith.constant 0 : index
    %c0_2 = arith.constant 0 : index
    %1 = vector.load %arg1[%c0_1, %c0_2] : memref<128x256xf32, #tpu.memory_space<vmem>>, vector<128x256xf32>
    %cst = arith.constant dense<0.000000e+00> : vector<1x256xf32>
    %2 = tpu.matmul %0, %1, %cst {dimension_numbers = #tpu.dot_dimension_numbers<[1], [0], [0], [1], [0, 0, 1, 1], [], []>} : vector<1x128xf32>, vector<128x256xf32>, vector<1x256xf32> -> vector<1x256xf32>
    %cst_3 = arith.constant 0.000000e+00 : f32
    %3 = vector.broadcast %cst_3 : f32 to vector<1x256xf32>
    %4 = arith.maximumf %2, %3 : vector<1x256xf32>
    %c0_4 = arith.constant 0 : index
    %c0_5 = arith.constant 0 : index
    %5 = vector.load %arg2[%c0_4, %c0_5] : memref<256x128xf32, #tpu.memory_space<vmem>>, vector<256x128xf32>
    %cst_6 = arith.constant dense<0.000000e+00> : vector<1x128xf32>
    %6 = tpu.matmul %4, %5, %cst_6 {dimension_numbers = #tpu.dot_dimension_numbers<[1], [0], [0], [1], [0, 0, 1, 1], [], []>} : vector<1x256xf32>, vector<256x128xf32>, vector<1x128xf32> -> vector<1x128xf32>
    %c0_7 = arith.constant 0 : index
    %c0_8 = arith.constant 0 : index
    %7 = vector.load %arg3[%c0_7, %c0_8] : memref<1x128xf32, #tpu.memory_space<vmem>>, vector<1x128xf32>
    tpu.vector_store %arg3[%c0_7, %c0_8], %6 {strides = array<i32>} : memref<1x128xf32, #tpu.memory_space<vmem>>, vector<1x128xf32>,
    return
  }
}

</mosaic_0001>

<llo_original>
// kernel: tpu_custom_call.1
$region0: #{tpu_custom_call.1}
  #allocation0 [shape = 'u32[]', space=smem, size = 0x4, offset = 0x4, fixed_abs, tag = 'smem constant byte address 0x4 - core index']
  #allocation1 [shape = 'u32[144,128]{1,0:T(1,128)}', space=vmem, size = 0x12000, scoped, tag = 'internal scratch']
  %s0 = inlined_call_operand.hbm [shape: f32[1,128], index: 0, kind: input, shape index: {}]
  %s1 = inlined_call_operand.hbm [shape: f32[128,256], index: 1, kind: input, shape index: {}]
  %s2 = inlined_call_operand.hbm [shape: f32[256,128], index: 2, kind: input, shape index: {}]
  %s3 = inlined_call_operand.hbm [shape: f32[1,128], index: 3, kind: output, shape index: {}]
  %s4 = sld [smem:[#allocation0]]
  $region34: #{tpu_custom_call.1} parent=0
    _
  %s6 = ssub.s32 1, %s4
  %s7 = scalar_select 0, %s6, %s4
  $region1: #{tpu_custom_call.1} parent=0
    #allocation2 [shape = 'u8[512]{0}', space=vmem, size = 0x400, scoped, tag = 'input window, operand 0, single buffered']
    #allocation3 [shape = 's32[1]{0}', space=sflag, size = 0x4, scoped, tag = 'scoped memory for tpu_custom_call.1']
    #allocation4 [shape = 's32[1]{0}', space=sflag, size = 0x4, scoped, tag = 'scoped memory for tpu_custom_call.1']
    #allocation5 [shape = 'u8[131072]{0}', space=vmem, size = 0x20000, scoped, tag = 'input window, operand 1, single buffered']
    #allocation6 [shape = 's32[1]{0}', space=sflag, size = 0x4, scoped, tag = 'scoped memory for tpu_custom_call.1']
    #allocation7 [shape = 'u8[131072]{0}', space=vmem, size = 0x20000, scoped, tag = 'input window, operand 2, single buffered']
    #allocation8 [shape = 'u8[512]{0}', space=vmem, size = 0x400, scoped, tag = 'output window, operand 0, single buffered']
    %8 = vsyncpa [#allocation3], 0
    %9 = vsyncpa [#allocation6], 0
    %10 = vsyncpa [#allocation4], 0
    // Predicated region
    $region2: #{tpu_custom_call.1} parent=1 // pred_check
      _
    $region3: #{tpu_custom_call.1} parent=1 // pred_check_branch
      %12 = sbr.rel (0) target = $region5
    $region4: #{tpu_custom_call.1} parent=1 // pred_region
      %s14 = ssub.s32 16, 16
      %15 = vsyncadd [#allocation3], %s14
      %s17 = sshll.u32 [#allocation2], 4
      %s18 = int_to_ptr.vmem [resolvable:$true] %s17
      %20 = dma.hbm_to_vmem [thread:$0]  %s0, 16, %s18, [#allocation3]
    $region5: #{tpu_custom_call.1} parent=1 // pred_fallthru
      _
    // Predicated region
    $region6: #{tpu_custom_call.1} parent=1 // pred_check
      _
    $region7: #{tpu_custom_call.1} parent=1 // pred_check_branch
      %22 = sbr.rel (0) target = $region9
    $region8: #{tpu_custom_call.1} parent=1 // pred_region
      %s24 = ssub.s32 4096, 4096
      %25 = vsyncadd [#allocation6], %s24
      %s26 = sshll.u32 [#allocation5], 4
      %s27 = int_to_ptr.vmem [resolvable:$true] %s26
      %32 = dma.hbm_to_vmem [thread:$0]  %s1, 4096, %s27, [#allocation6], 256, 256, 16
    $region9: #{tpu_custom_call.1} parent=1 // pred_fallthru
      _
    // Predicated region
    $region10: #{tpu_custom_call.1} parent=1 // pred_check
      _
    $region11: #{tpu_custom_call.1} parent=1 // pred_check_branch
      %34 = sbr.rel (0) target = $region13
    $region12: #{tpu_custom_call.1} parent=1 // pred_region
      %s36 = ssub.s32 4096, 4096
      %37 = vsyncadd [#allocation6], %s36
      %s38 = sshll.u32 [#allocation7], 4
      %s39 = int_to_ptr.vmem [resolvable:$true] %s38
      %44 = dma.hbm_to_vmem [thread:$0]  %s2, 4096, %s39, [#allocation6], 128, 128, 8
    $region13: #{tpu_custom_call.1} parent=1 // pred_fallthru
      _
    // Predicated region
    $region14: #{tpu_custom_call.1} parent=1 // pred_check
      _
    $region15: #{tpu_custom_call.1} parent=1 // pred_check_branch
      %46 = sbr.rel (0) target = $region17
    $region16: #{tpu_custom_call.1} parent=1 // pred_region
      %47 = dma.done [#allocation3], 16
    $region17: #{tpu_custom_call.1} parent=1 // pred_fallthru
      _
    // Predicated region
    $region18: #{tpu_custom_call.1} parent=1 // pred_check
      _
    $region19: #{tpu_custom_call.1} parent=1 // pred_check_branch
      %49 = sbr.rel (0) target = $region21
    $region20: #{tpu_custom_call.1} parent=1 // pred_region
      %50 = dma.done [#allocation6], 4096
    $region21: #{tpu_custom_call.1} parent=1 // pred_fallthru
      _
    // Predicated region
    $region22: #{tpu_custom_call.1} parent=1 // pred_check
      _
    $region23: #{tpu_custom_call.1} parent=1 // pred_check_branch
      %52 = sbr.rel (0) target = $region25
    $region24: #{tpu_custom_call.1} parent=1 // pred_region
      %53 = dma.done [#allocation6], 4096
    $region25: #{tpu_custom_call.1} parent=1 // pred_fallthru
      _
    %v54 = vld [vmem:[#allocation2] sm:$0x1]
    %v55 = vld [vmem:[#allocation5] sm:$0xff]
    %v56 = vld [vmem:[#allocation5 + $0x8] sm:$0xff]
    %v57 = vld [vmem:[#allocation5 + $0x10] sm:$0xff]
    %v58 = vld [vmem:[#allocation5 + $0x18] sm:$0xff]
    %v59 = vld [vmem:[#allocation5 + $0x20] sm:$0xff]
    %v60 = vld [vmem:[#allocation5 + $0x28] sm:$0xff]
    %v61 = vld [vmem:[#allocation5 + $0x30] sm:$0xff]
    %v62 = vld [vmem:[#allocation5 + $0x38] sm:$0xff]
    %v63 = vld [vmem:[#allocation5 + $0x40] sm:$0xff]
    %v64 = vld [vmem:[#allocation5 + $0x48] sm:$0xff]
    %v65 = vld [vmem:[#allocation5 + $0x50] sm:$0xff]
    %v66 = vld [vmem:[#allocation5 + $0x58] sm:$0xff]
    %v67 = vld [vmem:[#allocation5 + $0x60] sm:$0xff]
    %v68 = vld [vmem:[#allocation5 + $0x68] sm:$0xff]
    %v69 = vld [vmem:[#allocation5 + $0x70] sm:$0xff]
    %v70 = vld [vmem:[#allocation5 + $0x78] sm:$0xff]
    %v71 = vld [vmem:[#allocation5 + $0x80] sm:$0xff]
    %v72 = vld [vmem:[#allocation5 + $0x88] sm:$0xff]
    %v73 = vld [vmem:[#allocation5 + $0x90] sm:$0xff]
    %v74 = vld [vmem:[#allocation5 + $0x98] sm:$0xff]
    %v75 = vld [vmem:[#allocation5 + $0xa0] sm:$0xff]
    %v76 = vld [vmem:[#allocation5 + $0xa8] sm:$0xff]
    %v77 = vld [vmem:[#allocation5 + $0xb0] sm:$0xff]
    %v78 = vld [vmem:[#allocation5 + $0xb8] sm:$0xff]
    %v79 = vld [vmem:[#allocation5 + $0xc0] sm:$0xff]
    %v80 = vld [vmem:[#allocation5 + $0xc8] sm:$0xff]
    %v81 = vld [vmem:[#allocation5 + $0xd0] sm:$0xff]
    %v82 = vld [vmem:[#allocation5 + $0xd8] sm:$0xff]
    %v83 = vld [vmem:[#allocation5 + $0xe0] sm:$0xff]
    %v84 = vld [vmem:[#allocation5 + $0xe8] sm:$0xff]
    %v85 = vld [vmem:[#allocation5 + $0xf0] sm:$0xff]
    %v86 = vld [vmem:[#allocation5 + $0xf8] sm:$0xff]
    %87 = vmatprep.subr.mxu0 %v56
    %88 = vmatpush1.msra.mxu0 %v55
    %89 = vmatprep.subr.mxu0 %v58
    %90 = vmatpush1.msra.mxu0 %v57
    %91 = vmatprep.subr.mxu0 %v60
    %92 = vmatpush1.msra.mxu0 %v59
    %93 = vmatprep.subr.mxu0 %v62
    %94 = vmatpush1.msra.mxu0 %v61
    %95 = vmatprep.subr.mxu0 %v64
    %96 = vmatpush1.msra.mxu0 %v63
    %97 = vmatprep.subr.mxu0 %v66
    %98 = vmatpush1.msra.mxu0 %v65
    %99 = vmatprep.subr.mxu0 %v68
    %100 = vmatpush1.msra.mxu0 %v67
    %101 = vmatprep.subr.mxu0 %v70
    %102 = vmatpush1.msra.mxu0 %v69
    %103 = vmatprep.subr.mxu0 %v72
    %104 = vmatpush1.msra.mxu0 %v71
    %105 = vmatprep.subr.mxu0 %v74
    %106 = vmatpush1.msra.mxu0 %v73
    %107 = vmatprep.subr.mxu0 %v76
    %108 = vmatpush1.msra.mxu0 %v75
    %109 = vmatprep.subr.mxu0 %v78
    %110 = vmatpush1.msra.mxu0 %v77
    %111 = vmatprep.subr.mxu0 %v80
    %112 = vmatpush1.msra.mxu0 %v79
    %113 = vmatprep.subr.mxu0 %v82
    %114 = vmatpush1.msra.mxu0 %v81
    %115 = vmatprep.subr.mxu0 %v84
    %116 = vmatpush1.msra.mxu0 %v83
    %117 = vmatprep.subr.mxu0 %v86
    %118 = vmatpush1.msra.mxu0 %v85
    %119 = vmatprep.subr.mxu0 0.0
    %120 = vmatpush1.msra.mxu0 0.0
    %121 = vmatprep.subr.mxu0 0.0
    %122 = vmatpush1.msra.mxu0 0.0
    %123 = vmatprep.subr.mxu0 0.0
    %124 = vmatpush1.msra.mxu0 0.0
    %125 = vmatprep.subr.mxu0 0.0
    %126 = vmatpush1.msra.mxu0 0.0
    %127 = vmatprep.subr.mxu0 0.0
    %128 = vmatpush1.msra.mxu0 0.0
    %129 = vmatprep.subr.mxu0 0.0
    %130 = vmatpush1.msra.mxu0 0.0
    %131 = vmatprep.subr.mxu0 0.0
    %132 = vmatpush1.msra.mxu0 0.0
    %133 = vmatprep.subr.mxu0 0.0
    %134 = vmatpush1.msra.mxu0 0.0
    %135 = vmatprep.subr.mxu0 0.0
    %136 = vmatpush1.msra.mxu0 0.0
    %137 = vmatprep.subr.mxu0 0.0
    %138 = vmatpush1.msra.mxu0 0.0
    %139 = vmatprep.subr.mxu0 0.0
    %140 = vmatpush1.msra.mxu0 0.0
    %141 = vmatprep.subr.mxu0 0.0
    %142 = vmatpush1.msra.mxu0 0.0
    %143 = vmatprep.subr.mxu0 0.0
    %144 = vmatpush1.msra.mxu0 0.0
    %145 = vmatprep.subr.mxu0 0.0
    %146 = vmatpush1.msra.mxu0 0.0
    %147 = vmatprep.subr.mxu0 0.0
    %148 = vmatpush1.msra.mxu0 0.0
    %149 = vmatprep.subr.mxu0 0.0
    %150 = vmatpush1.msra.mxu0 0.0
    %151 = vmatprep.mubr.f32.mxu0 0.0
    %152 = vmatmul.mubr.f32.gmra.mrb[0].mxu0 %v54
    %v153 = vpop.f32.mrb[0].mxu0
    %v154 = vadd.f32 0.0, %v153
    %v155 = vpop.f32.mrb[0].mxu0
    %v156 = vadd.f32 0.0, %v155
    %157 = vdwg.mxu0
    %v158 = vmax.f32 %v154, 0.0
    %v159 = vmax.f32 %v156, 0.0
    %v160 = vld [vmem:[#allocation7] sm:$0xff]
    %v161 = vld [vmem:[#allocation7 + $0x8] sm:$0xff]
    %v162 = vld [vmem:[#allocation7 + $0x10] sm:$0xff]
    %v163 = vld [vmem:[#allocation7 + $0x18] sm:$0xff]
    %v164 = vld [vmem:[#allocation7 + $0x20] sm:$0xff]
    %v165 = vld [vmem:[#allocation7 + $0x28] sm:$0xff]
    %v166 = vld [vmem:[#allocation7 + $0x30] sm:$0xff]
    %v167 = vld [vmem:[#allocation7 + $0x38] sm:$0xff]
    %v168 = vld [vmem:[#allocation7 + $0x40] sm:$0xff]
    %v169 = vld [vmem:[#allocation7 + $0x48] sm:$0xff]
    %v170 = vld [vmem:[#allocation7 + $0x50] sm:$0xff]
    %v171 = vld [vmem:[#allocation7 + $0x58] sm:$0xff]
    %v172 = vld [vmem:[#allocation7 + $0x60] sm:$0xff]
    %v173 = vld [vmem:[#allocation7 + $0x68] sm:$0xff]
    %v174 = vld [vmem:[#allocation7 + $0x70] sm:$0xff]
    %v175 = vld [vmem:[#allocation7 + $0x78] sm:$0xff]
    %v176 = vld [vmem:[#allocation7 + $0x80] sm:$0xff]
    %v177 = vld [vmem:[#allocation7 + $0x88] sm:$0xff]
    %v178 = vld [vmem:[#allocation7 + $0x90] sm:$0xff]
    %v179 = vld [vmem:[#allocation7 + $0x98] sm:$0xff]
    %v180 = vld [vmem:[#allocation7 + $0xa0] sm:$0xff]
    %v181 = vld [vmem:[#allocation7 + $0xa8] sm:$0xff]
    %v182 = vld [vmem:[#allocation7 + $0xb0] sm:$0xff]
    %v183 = vld [vmem:[#allocation7 + $0xb8] sm:$0xff]
    %v184 = vld [vmem:[#allocation7 + $0xc0] sm:$0xff]
    %v185 = vld [vmem:[#allocation7 + $0xc8] sm:$0xff]
    %v186 = vld [vmem:[#allocation7 + $0xd0] sm:$0xff]
    %v187 = vld [vmem:[#allocation7 + $0xd8] sm:$0xff]
    %v188 = vld [vmem:[#allocation7 + $0xe0] sm:$0xff]
    %v189 = vld [vmem:[#allocation7 + $0xe8] sm:$0xff]
    %v190 = vld [vmem:[#allocation7 + $0xf0] sm:$0xff]
    %v191 = vld [vmem:[#allocation7 + $0xf8] sm:$0xff]
    %192 = vmatprep.subr.mxu0 0.0
    %193 = vmatpush1.msra.mxu0 %v160
    %194 = vmatprep.subr.mxu0 0.0
    %195 = vmatpush1.msra.mxu0 %v161
    %196 = vmatprep.subr.mxu0 0.0
    %197 = vmatpush1.msra.mxu0 %v162
    %198 = vmatprep.subr.mxu0 0.0
    %199 = vmatpush1.msra.mxu0 %v163
    %200 = vmatprep.subr.mxu0 0.0
    %201 = vmatpush1.msra.mxu0 %v164
    %202 = vmatprep.subr.mxu0 0.0
    %203 = vmatpush1.msra.mxu0 %v165
    %204 = vmatprep.subr.mxu0 0.0
    %205 = vmatpush1.msra.mxu0 %v166
    %206 = vmatprep.subr.mxu0 0.0
    %207 = vmatpush1.msra.mxu0 %v167
    %208 = vmatprep.subr.mxu0 0.0
    %209 = vmatpush1.msra.mxu0 %v168
    %210 = vmatprep.subr.mxu0 0.0
    %211 = vmatpush1.msra.mxu0 %v169
    %212 = vmatprep.subr.mxu0 0.0
    %213 = vmatpush1.msra.mxu0 %v170
    %214 = vmatprep.subr.mxu0 0.0
    %215 = vmatpush1.msra.mxu0 %v171
    %216 = vmatprep.subr.mxu0 0.0
    %217 = vmatpush1.msra.mxu0 %v172
    %218 = vmatprep.subr.mxu0 0.0
    %219 = vmatpush1.msra.mxu0 %v173
    %220 = vmatprep.subr.mxu0 0.0
    %221 = vmatpush1.msra.mxu0 %v174
    %222 = vmatprep.subr.mxu0 0.0
    %223 = vmatpush1.msra.mxu0 %v175
    %224 = vmatprep.subr.mxu0 0.0
    %225 = vmatpush1.msra.mxu0 %v176
    %226 = vmatprep.subr.mxu0 0.0
    %227 = vmatpush1.msra.mxu0 %v177
    %228 = vmatprep.subr.mxu0 0.0
    %229 = vmatpush1.msra.mxu0 %v178
    %230 = vmatprep.subr.mxu0 0.0
    %231 = vmatpush1.msra.mxu0 %v179
    %232 = vmatprep.subr.mxu0 0.0
    %233 = vmatpush1.msra.mxu0 %v180
    %234 = vmatprep.subr.mxu0 0.0
    %235 = vmatpush1.msra.mxu0 %v181
    %236 = vmatprep.subr.mxu0 0.0
    %237 = vmatpush1.msra.mxu0 %v182
    %238 = vmatprep.subr.mxu0 0.0
    %239 = vmatpush1.msra.mxu0 %v183
    %240 = vmatprep.subr.mxu0 0.0
    %241 = vmatpush1.msra.mxu0 %v184
    %242 = vmatprep.subr.mxu0 0.0
    %243 = vmatpush1.msra.mxu0 %v185
    %244 = vmatprep.subr.mxu0 0.0
    %245 = vmatpush1.msra.mxu0 %v186
    %246 = vmatprep.subr.mxu0 0.0
    %247 = vmatpush1.msra.mxu0 %v187
    %248 = vmatprep.subr.mxu0 0.0
    %249 = vmatpush1.msra.mxu0 %v188
    %250 = vmatprep.subr.mxu0 0.0
    %251 = vmatpush1.msra.mxu0 %v189
    %252 = vmatprep.subr.mxu0 0.0
    %253 = vmatpush1.msra.mxu0 %v190
    %254 = vmatprep.subr.mxu0 0.0
    %255 = vmatpush1.msra.mxu0 %v191
    %256 = vmatprep.mubr.f32.mxu0 %v159
    %257 = vmatmul.mubr.f32.gmra.mrb[0].mxu0 %v158
    %v258 = vpop.f32.mrb[0].mxu0
    %v259 = vadd.f32 0.0, %v258
    %v260 = vpop.f32.mrb[0].mxu0
    %261 = vdwg.mxu0
    %262 = vst [vmem:[#allocation8] sm:$0x1] %v259
    // Predicated region
    $region26: #{tpu_custom_call.1} parent=1 // pred_check
      _
    $region27: #{tpu_custom_call.1} parent=1 // pred_check_branch
      %264 = sbr.rel (0) target = $region29
    $region28: #{tpu_custom_call.1} parent=1 // pred_region
      %s266 = ssub.s32 16, 16
      %267 = vsyncadd [#allocation4], %s266
      %s269 = sshll.u32 [#allocation8], 4
      %s270 = int_to_ptr.vmem [resolvable:$true] %s269
      %272 = dma.vmem_to_hbm [thread:$0]  %s270, 16, %s3, [#allocation4]
    $region29: #{tpu_custom_call.1} parent=1 // pred_fallthru
      _
    // Predicated region
    $region30: #{tpu_custom_call.1} parent=1 // pred_check
      _
    $region31: #{tpu_custom_call.1} parent=1 // pred_check_branch
      %274 = sbr.rel (0) target = $region33
    $region32: #{tpu_custom_call.1} parent=1 // pred_region
      %275 = dma.done [#allocation4], 16
    $region33: #{tpu_custom_call.1} parent=1 // pred_fallthru
      _
    %276 = vsyncpa [#allocation3], 1
    %277 = vsyncpa [#allocation6], 1
    %278 = vsyncpa [#allocation4], 1

</llo_original>
